<compile_context>
chip_gen: v6e
topology: v6e:2x2x1
jax: 0.10.0
libtpu: 0.0.40
codegen_flags: <defaults>
</compile_context>

<pallas_src>
import math

import jax
import jax.numpy as jnp
from jax import lax
from jax.experimental import pallas as pl
from jax.experimental.pallas import tpu as pltpu


def _round_up(x, m):
    return ((x + m - 1) // m) * m


def _sublane_multiple(itemsize):
    # Packed-sublane multiple: f32 -> 8, bf16/f16 -> 16, int8/fp8 -> 32.
    return {1: 32, 2: 16}.get(itemsize, 8)


def _vmem_budget(vmem_limit_bytes):
    """Generation-aware (VMEM-capacity-aware) pipeline budget."""
    try:
        vmem_cap = int(pltpu.get_tpu_info().vmem_capacity_bytes)
    except Exception:
        vmem_cap = 64 * 1024 * 1024  # conservative: assume v7x-sized VMEM
    if vmem_limit_bytes is None:
        # Leave headroom for Mosaic-internal scratch and elementwise temps.
        vmem_limit_bytes = min(int(vmem_cap * 0.85), 96 * 1024 * 1024)
    # Per-input-buffer cap (the pipeline double-buffers the input block).
    in_buf_cap = max(512 * 1024,
                     min(16 * 1024 * 1024, int(vmem_limit_bytes * 0.22)))
    small_vmem = vmem_cap < 100 * 1024 * 1024   # v7x: 64 MiB VMEM, 2 TCs
    return vmem_limit_bytes, in_buf_cap, small_vmem


def _molfp_single_kernel(x_ref, bias_ref, out_ref):
    # Fast path: whole node axis in one block.
    # x_ref: (TB, N, TF)   bias_ref: (1, TF)   out_ref: (TB, TF)
    s = jnp.sum(x_ref[...].astype(jnp.float32), axis=1)
    out_ref[...] = (s + bias_ref[...]).astype(out_ref.dtype)


def _make_molfp_multi_kernel(n_total, tn, mask_tail):
    def kernel(x_ref, bias_ref, out_ref, acc_ref):
        # x_ref: (TB, TN, TF)   bias_ref: (1, TF)
        # out_ref: (TB, TF)     acc_ref: (TB, 8, TF) f32, resident across k
        k = pl.program_id(2)

        @pl.when(k == 0)
        def _init():
            acc_ref[...] = jnp.zeros_like(acc_ref)

        x = x_ref[...].astype(jnp.float32)
        if mask_tail:
            # Ragged final node chunk: zero out-of-range node rows (sum-safe).
            rem = n_total - k * tn
            node_idx = lax.broadcasted_iota(jnp.int32, x.shape, 1)
            x = jnp.where(node_idx < rem, x, 0.0)

        tb, _, tf = x.shape
        # Pure-VALU partial reduce: fold groups of 8 nodes (one sublane tile
        # each) into the (TB, 8, TF) accumulator; the 8->1 sublane (XLU)
        # reduce is deferred to the finalize step, so the steady-state loop
        # under the DMA is just vector loads + adds.
        acc_ref[...] += x.reshape(tb, tn // 8, 8, tf).sum(axis=1)

        @pl.when(k == pl.num_programs(2) - 1)
        def _finalize():
            total = jnp.sum(acc_ref[...], axis=1)              # (TB, TF)
            out_ref[...] = (total + bias_ref[...]).astype(out_ref.dtype)

    return kernel


def molfp_forward(x, bias=None, *, tb=None, tf=None, tn=None,
                  vmem_limit_bytes=None):
    """MolFP forward: out[b, f] = sum_n x[b, n, f] (+ bias[f]).

    x:    (B, N, F)
    bias: (F,) or None
    """
    B, N, F = x.shape
    dtype = x.dtype
    itemsize = jnp.dtype(dtype).itemsize
    sub = _sublane_multiple(itemsize)

    vmem_limit_bytes, in_buf_cap, small_vmem = _vmem_budget(vmem_limit_bytes)

    # ---- tile sizing -------------------------------------------------------
    # Batch tile: one packed output sublane tile, or the full (tiny) batch.
    if tb is None:
        TB = B if B <= sub else sub
    else:
        TB = min(tb, B)
        if TB < B and TB % sub != 0:
            raise ValueError(f"tb={tb} must be a multiple of {sub} for {dtype}")

    # Feature tile: full width by default (contiguous runs, no over-read).
    if tf is None:
        TF = F
        if TB * sub * F * itemsize > in_buf_cap:
            # Huge F: fall back to lane-aligned feature tiling.
            TF = max(128, (in_buf_cap // (TB * sub * itemsize)) // 128 * 128)
        elif (small_vmem and B <= TB and F >= 256
              and B * N * F * itemsize >= 4 * 1024 * 1024):
            # v7x has 2 TensorCores and only "parallel" axes get sharded across
            # them; with a single batch tile, split F so both cores get work.
            TF = _round_up(pl.cdiv(F, 2), 128)
    else:
        TF = min(tf, F)
        if TF < F and TF % 128 != 0:
            raise ValueError(f"tf={tf} must be a multiple of 128")

    # Node chunk: largest packed-sublane multiple within the per-buffer budget.
    if tn is None:
        tn_cap = max(sub, (in_buf_cap // (TB * TF * itemsize)) // sub * sub)
        TN = N if N <= tn_cap else tn_cap
    else:
        TN = min(tn, N)
        if TN < N and TN % sub != 0:
            raise ValueError(f"tn={tn} must be a multiple of {sub} for {dtype}")

    # ---- bias (tiny; cast to f32 so the add happens in the accumulator dtype)
    if bias is None:
        bias = jnp.zeros((F,), dtype=jnp.float32)
    bias2d = bias.reshape(1, F).astype(jnp.float32)

    b_tiles = pl.cdiv(B, TB)
    f_tiles = pl.cdiv(F, TF)
    n_chunks = pl.cdiv(N, TN)

    out_shape = jax.ShapeDtypeStruct((B, F), dtype)

    if n_chunks == 1:
        # Single-chunk fast path: no accumulator scratch, no init/finalize.
        return pl.pallas_call(
            _molfp_single_kernel,
            out_shape=out_shape,
            grid_spec=pltpu.PrefetchScalarGridSpec(
                num_scalar_prefetch=0,
                grid=(b_tiles, f_tiles),
                in_specs=[
                    pl.BlockSpec((TB, N, TF), lambda i, j: (i, 0, j)),
                    pl.BlockSpec((1, TF), lambda i, j: (0, j)),
                ],
                out_specs=pl.BlockSpec((TB, TF), lambda i, j: (i, j)),
            ),
            compiler_params=pltpu.CompilerParams(
                dimension_semantics=("parallel", "parallel"),
                vmem_limit_bytes=vmem_limit_bytes,
            ),
        )(x, bias2d)

    kernel = _make_molfp_multi_kernel(N, TN, mask_tail=(N % TN != 0))
    # NOTE: if xprof ever shows exposed DMA between k-steps (e.g. TF < F making
    # strided copies), add pipeline_mode=pl.Buffered(3) on the x BlockSpec for
    # 128 MiB-VMEM parts; keep the default 2 buffers on v7x.
    return pl.pallas_call(
        kernel,
        out_shape=out_shape,
        grid_spec=pltpu.PrefetchScalarGridSpec(
            num_scalar_prefetch=0,
            grid=(b_tiles, f_tiles, n_chunks),
            in_specs=[
                pl.BlockSpec((TB, TN, TF), lambda i, j, k: (i, k, j)),
                pl.BlockSpec((1, TF), lambda i, j, k: (0, j)),
            ],
            out_specs=pl.BlockSpec((TB, TF), lambda i, j, k: (i, j)),
            scratch_shapes=[pltpu.VMEM((TB, 8, TF), jnp.float32)],
        ),
        compiler_params=pltpu.CompilerParams(
            dimension_semantics=("parallel", "parallel", "arbitrary"),
            vmem_limit_bytes=vmem_limit_bytes,
        ),
    )(x, bias2d)


def init_molfp_params(key, out_features):
    """Deterministic init mirroring MolFP.reset_parameters().

    weight: (1, out_features) -- allocated by the module but UNUSED in forward.
    bias:   (out_features,)
    """
    stdv = 1.0 / math.sqrt(out_features)
    k_w, k_b = jax.random.split(key)
    weight = jax.random.uniform(
        k_w, (1, out_features), minval=-stdv, maxval=stdv, dtype=jnp.float32
    )
    bias = jax.random.uniform(
        k_b, (out_features,), minval=-stdv, maxval=stdv, dtype=jnp.float32
    )
    return weight, bias


if __name__ == "__main__":
    key = jax.random.PRNGKey(0)
    k_params, k_x1, k_x2, k_x3 = jax.random.split(key, 4)

    # Case 1: small shapes matching the module's forward (single-chunk path).
    batch, n_nodes, out_features = 2, 8, 32
    weight, bias = init_molfp_params(k_params, out_features)  # weight unused in fwd
    x = jax.random.normal(k_x1, (batch, n_nodes, out_features), dtype=jnp.float32)
    out = jax.block_until_ready(molfp_forward(x, bias))
    ref = jnp.sum(x, axis=1) + bias
    assert out.shape == (batch, out_features)
    assert jnp.allclose(out, ref, atol=1e-5, rtol=1e-5)

    # Case 2: unaligned shapes + forced node chunking: exercises the ragged
    # masked tail, the resident (TB,8,TF) accumulator and the finalize store.
    B2, N2, F2 = 16, 300, 200
    _, bias2 = init_molfp_params(k_params, F2)
    x2 = jax.random.normal(k_x2, (B2, N2, F2), dtype=jnp.float32)
    out2 = jax.block_until_ready(molfp_forward(x2, bias2, tn=128))
    ref2 = jnp.sum(x2, axis=1) + bias2
    assert out2.shape == (B2, F2)
    assert jnp.allclose(out2, ref2, atol=1e-4, rtol=1e-5)

    # Case 3: bf16 input, ragged batch/node/feature dims, forced chunking
    # (packed-sublane handling + f32 accumulation with a bf16 output cast).
    B3, N3, F3 = 10, 70, 160
    _, bias3 = init_molfp_params(k_params, F3)
    x3 = jax.random.normal(k_x3, (B3, N3, F3), dtype=jnp.float32).astype(jnp.bfloat16)
    out3 = jax.block_until_ready(molfp_forward(x3, bias3, tn=32))
    ref3 = (jnp.sum(x3.astype(jnp.float32), axis=1) + bias3).astype(jnp.bfloat16)
    assert out3.shape == (B3, F3)
    assert jnp.allclose(out3.astype(jnp.float32), ref3.astype(jnp.float32),
                        atol=0.15, rtol=0.05)

    print("KERNEL_OK")
</pallas_src>

<mosaic_0001>
module attributes {stable_mosaic.version = 11 : i64} {
  func.func @_molfp_single_kernel(%arg0: i32, %arg1: i32, %arg2: memref<2x8x32xf32, #tpu.memory_space<vmem>>, %arg3: memref<1x32xf32, #tpu.memory_space<vmem>>, %arg4: memref<2x32xf32, #tpu.memory_space<vmem>>) attributes {dimension_semantics = [#tpu.dimension_semantics<parallel>, #tpu.dimension_semantics<parallel>], iteration_bounds = array<i64: 1, 1>, scalar_prefetch = 0 : i64, scratch_operands = 0 : i64, tpu.core_type = #tpu.core_type<tc>, window_params = [{transform_indices = @transform_0, window_bounds = array<i64: 2, 8, 32>}, {transform_indices = @transform_1, window_bounds = array<i64: 1, 32>}, {transform_indices = @transform_2, window_bounds = array<i64: 2, 32>}]} {
    %c0 = arith.constant 0 : index
    %c0_0 = arith.constant 0 : index
    %c0_1 = arith.constant 0 : index
    %0 = vector.load %arg2[%c0, %c0_0, %c0_1] : memref<2x8x32xf32, #tpu.memory_space<vmem>>, vector<2x8x32xf32>
    %cst = arith.constant dense<0.000000e+00> : vector<2x32xf32>
    %1 = vector.multi_reduction <add>, %0, %cst [1] : vector<2x8x32xf32> to vector<2x32xf32>
    %c0_2 = arith.constant 0 : index
    %c0_3 = arith.constant 0 : index
    %2 = vector.load %arg3[%c0_2, %c0_3] : memref<1x32xf32, #tpu.memory_space<vmem>>, vector<1x32xf32>
    %3 = vector.broadcast %2 : vector<1x32xf32> to vector<2x32xf32>
    %4 = arith.addf %1, %3 : vector<2x32xf32>
    %c0_4 = arith.constant 0 : index
    %c0_5 = arith.constant 0 : index
    %5 = vector.load %arg4[%c0_4, %c0_5] : memref<2x32xf32, #tpu.memory_space<vmem>>, vector<2x32xf32>
    tpu.vector_store %arg4[%c0_4, %c0_5], %4 {strides = array<i32>} : memref<2x32xf32, #tpu.memory_space<vmem>>, vector<2x32xf32>,
    return
  }
  func.func @transform_0(%arg0: i32, %arg1: i32) -> (i32, i32, i32) {
    %c0_i32 = arith.constant 0 : i32
    %c0_i32_0 = arith.constant 0 : i32
    return %arg0, %c0_i32, %arg1 : i32, i32, i32
  }
  func.func @transform_1(%arg0: i32, %arg1: i32) -> (i32, i32) {
    %c0_i32 = arith.constant 0 : i32
    %c0_i32_0 = arith.constant 0 : i32
    return %c0_i32, %arg1 : i32, i32
  }
  func.func @transform_2(%arg0: i32, %arg1: i32) -> (i32, i32) {
    %c0_i32 = arith.constant 0 : i32
    return %arg0, %arg1 : i32, i32
  }
}

</mosaic_0001>

<llo_original>
// kernel: tpu_custom_call.1
$region0: #{tpu_custom_call.1}
  #allocation0 [shape = 'u32[]', space=smem, size = 0x4, offset = 0x4, fixed_abs, tag = 'smem constant byte address 0x4 - core index']
  #allocation1 [shape = 'u32[144,128]{1,0:T(1,128)}', space=vmem, size = 0x12000, scoped, tag = 'internal scratch']
  %s0 = inlined_call_operand.hbm [shape: f32[2,8,32], index: 0, kind: input, shape index: {}]
  %s1 = inlined_call_operand.vmem [shape: f32[1,32], index: 1, kind: input, shape index: {}]
  %s2 = inlined_call_operand.hbm [shape: f32[2,32], index: 2, kind: output, shape index: {}]
  %s3 = sld [smem:[#allocation0]]
  $region22: #{tpu_custom_call.1} parent=0
    _
  %s5 = ssub.s32 1, %s3
  %s6 = scalar_select 0, %s5, %s3
  $region1: #{tpu_custom_call.1} parent=0
    #allocation2 [shape = 'u8[8192]{0}', space=vmem, size = 0x2000, scoped, tag = 'input window, operand 0, single buffered']
    #allocation3 [shape = 's32[1]{0}', space=sflag, size = 0x4, scoped, tag = 'scoped memory for tpu_custom_call.1']
    #allocation4 [shape = 's32[1]{0}', space=sflag, size = 0x4, scoped, tag = 'scoped memory for tpu_custom_call.1']
    #allocation5 [shape = 'u8[1024]{0}', space=vmem, size = 0x400, scoped, tag = 'output window, operand 0, single buffered']
    %7 = vsyncpa [#allocation3], 0
    %8 = vsyncpa [#allocation4], 0
    // Predicated region
    $region2: #{tpu_custom_call.1} parent=1 // pred_check
      _
    $region3: #{tpu_custom_call.1} parent=1 // pred_check_branch
      %10 = sbr.rel (0) target = $region5
    $region4: #{tpu_custom_call.1} parent=1 // pred_region
      %s12 = ssub.s32 256, 256
      %13 = vsyncadd [#allocation3], %s12
      %s14 = sshll.u32 [#allocation2], 4
      %s15 = int_to_ptr.vmem [resolvable:$true] %s14
      %20 = dma.hbm_to_vmem [thread:$0]  %s0, 256, %s15, [#allocation3], 128, 128, 8
    $region5: #{tpu_custom_call.1} parent=1 // pred_fallthru
      _
    // Predicated region
    $region6: #{tpu_custom_call.1} parent=1 // pred_check
      _
    $region7: #{tpu_custom_call.1} parent=1 // pred_check_branch
      %22 = sbr.rel (0) target = $region9
    $region8: #{tpu_custom_call.1} parent=1 // pred_region
      _
    $region9: #{tpu_custom_call.1} parent=1 // pred_fallthru
      _
    // Predicated region
    $region10: #{tpu_custom_call.1} parent=1 // pred_check
      _
    $region11: #{tpu_custom_call.1} parent=1 // pred_check_branch
      %24 = sbr.rel (0) target = $region13
    $region12: #{tpu_custom_call.1} parent=1 // pred_region
      %25 = dma.done [#allocation3], 256
    $region13: #{tpu_custom_call.1} parent=1 // pred_fallthru
      _
    %v26 = vld [vmem:[#allocation2] sm:$0xff]
    %v27 = vld [vmem:[#allocation2 + $0x8] sm:$0xff]
    %vm28 = vcmask 261120
    %v29 = vsel %vm28, %v26, 0.0
    %v30 = vrot.slane %v29, 4
    %v31 = vadd.f32 %v29, %v30
    %v32 = vrot.slane %v31, 2
    %v33 = vadd.f32 %v31, %v32
    %v34 = vrot.slane %v33, 1
    %v35 = vadd.f32 %v33, %v34
    %v36 = vsel %vm28, %v27, 0.0
    %v37 = vrot.slane %v36, 4
    %v38 = vadd.f32 %v36, %v37
    %v39 = vrot.slane %v38, 2
    %v40 = vadd.f32 %v38, %v39
    %v41 = vrot.slane %v40, 1
    %v42 = vadd.f32 %v40, %v41
    %v43 = vld [vmem:[%s1] sm:$0x1]
    %v45 = vlaneseq
    %v46 = vshrl.u32 %v45, 7
    %v47 = vsub.s32 0, %v46
    %v48 = vrot.slane %v43, %v47
    %v50 = vadd.f32 %v35, %v48
    %v51 = vadd.f32 %v42, %v48
    %v54 = vrot.slane %v51, 7
    %vm55 = vcmask 1041409
    %v56 = vsel %vm55, %v54, %v50
    %vm58 = vcmask 254976
    %59 = vst.msk [vmem:[#allocation5] sm:$0x3] %vm58, %v56
    // Predicated region
    $region14: #{tpu_custom_call.1} parent=1 // pred_check
      _
    $region15: #{tpu_custom_call.1} parent=1 // pred_check_branch
      %61 = sbr.rel (0) target = $region17
    $region16: #{tpu_custom_call.1} parent=1 // pred_region
      %s63 = ssub.s32 32, 32
      %64 = vsyncadd [#allocation4], %s63
      %s66 = sshll.u32 [#allocation5], 4
      %s67 = int_to_ptr.vmem [resolvable:$true] %s66
      %69 = dma.vmem_to_hbm [thread:$0]  %s67, 32, %s2, [#allocation4]
    $region17: #{tpu_custom_call.1} parent=1 // pred_fallthru
      _
    // Predicated region
    $region18: #{tpu_custom_call.1} parent=1 // pred_check
      _
    $region19: #{tpu_custom_call.1} parent=1 // pred_check_branch
      %71 = sbr.rel (0) target = $region21
    $region20: #{tpu_custom_call.1} parent=1 // pred_region
      %72 = dma.done [#allocation4], 32
    $region21: #{tpu_custom_call.1} parent=1 // pred_fallthru
      _
    %73 = vsyncpa [#allocation3], 1
    %74 = vsyncpa [#allocation4], 1

</llo_original>
